<compile_context>
chip_gen: v5e
topology: v5e:2x2
jax: 0.10.0
libtpu: 0.0.40
codegen_flags: <defaults>
</compile_context>

<pallas_src>
import functools

import numpy as np
import jax
import jax.numpy as jnp
from jax import lax
from jax.experimental import pallas as pl
from jax.experimental.pallas import tpu as pltpu

# ----------------------------- model dimensions -----------------------------
D_IN = 16          # input feature dim per frame
H = 32             # encoder / predictor / joiner hidden dim
E = 32             # predictor embedding dim
V = 12             # vocab size (incl. blank)
BLANK = V - 1      # blank must be last index (matches next_token_probs[:, :-1])
MAX_B = 8          # padded hypothesis batch for fixed-shape kernels (>= beam_width)
VPAD = 128         # lane-dense padded vocab width for the joiner output
VP = 16            # padded one-hot token width (>= V, sublane aligned)

# Merged per-step output slab layout (one lane-dense (MAX_B, 384) buffer):
LOGP_T_OFF = 0            # [0,   128) log-probs vs current frame t
LOGP_T1_OFF = VPAD        # [128, 256) log-probs vs next frame t+1 (cached)
PRED_OFF = 2 * VPAD       # [256, 288) predictor output
HS_OFF = PRED_OFF + H     # [288, 320) new LSTM hidden h
CS_OFF = HS_OFF + H       # [320, 352) new LSTM cell   c
OUT_W = 3 * VPAD          # [352, 384) zero pad

_VMEM = pl.BlockSpec(memory_space=pltpu.MemorySpace.VMEM)


# ------------------------------ Pallas kernels ------------------------------
def _encoder_kernel(x_ref, w_ref, b_ref, o_ref):
    # (T, D) @ (D, H) + (1, H) -> tanh -> (T, H)
    o_ref[...] = jnp.tanh(
        jnp.dot(x_ref[...], w_ref[...], preferred_element_type=jnp.float32)
        + b_ref[...]
    )


@functools.lru_cache(maxsize=None)
def _build_encoder(T, D, Hd):
    # TODO(synk): for realistic T, grid over ~512-row T tiles with a constant-index
    # weight BlockSpec and dimension_semantics=("parallel",) (2 TensorCores on v7x);
    # at the demo T this would only add pipeline overhead.
    return jax.jit(pl.pallas_call(
        _encoder_kernel,
        out_shape=jax.ShapeDtypeStruct((T, Hd), jnp.float32),
        in_specs=[_VMEM, _VMEM, _VMEM],
        out_specs=_VMEM,
    ))


def encoder_forward(x, w, b):
    T, D = x.shape
    return _build_encoder(int(T), int(D), int(w.shape[1]))(x, w, b)


def _step_kernel(tok_ref, sel_ref, state_ref, enc_ref,
                 w_tok_ref, w_h_ref, b_l_ref, w_po_ref, b_po_ref,
                 w_j_ref, b_j_ref, out_ref, *, inv_temp):
    """Fused beam-expansion step for MAX_B hypotheses.

    Gathers previous (h, c) from the device-resident state slab, runs one LSTM
    cell step, the output projection, and the additive joiner + log-softmax
    against both encoder frames in enc_ref (rows 0 = t, 1 = t+1).  Padded rows
    (>= actual batch) produce valid-looking but meaningless values; the host
    slices them off and any future in-kernel reduction over rows must mask them.
    """
    # Row gather of previous h / c via a one-hot selection matmul (no host
    # upload of the state; sel_ref is just MAX_B int32 values).
    sel = (lax.broadcasted_iota(jnp.int32, (MAX_B, MAX_B), 1)
           == sel_ref[...]).astype(jnp.float32)                      # (MAX_B, MAX_B)
    h_prev = jnp.dot(sel, state_ref[:, HS_OFF:HS_OFF + H],
                     preferred_element_type=jnp.float32)
    c_prev = jnp.dot(sel, state_ref[:, CS_OFF:CS_OFF + H],
                     preferred_element_type=jnp.float32)

    # Token embedding + input projection as one-hot @ (emb @ W_x) (rows padded
    # to VP=16 with zeros).  Gate order [i | f | o | g]: one sigmoid over 3H
    # contiguous lanes, one tanh over the last H lanes of the 128-lane gates.
    onehot = (lax.broadcasted_iota(jnp.int32, (MAX_B, VP), 1)
              == tok_ref[...]).astype(jnp.float32)                   # (MAX_B, VP)
    gates = (jnp.dot(onehot, w_tok_ref[...], preferred_element_type=jnp.float32)
             + jnp.dot(h_prev, w_h_ref[...], preferred_element_type=jnp.float32)
             + b_l_ref[...])                                         # (MAX_B, 4H)
    sig = jax.nn.sigmoid(gates[:, :3 * H])
    i_g = sig[:, 0:H]
    f_g = sig[:, H:2 * H]
    o_g = sig[:, 2 * H:3 * H]
    g_g = jnp.tanh(gates[:, 3 * H:4 * H])

    c_new = f_g * c_prev + i_g * g_g
    h_new = o_g * jnp.tanh(c_new)
    pred = jnp.tanh(
        jnp.dot(h_new, w_po_ref[...], preferred_element_type=jnp.float32)
        + b_po_ref[...]
    )

    def log_probs(enc_frame):                       # enc_frame (1, H)
        joint = jnp.maximum(enc_frame + pred, 0.0)
        # Padded joiner bias lanes are -1e30; scaled by inv_temp they may hit
        # -inf in f32, which still yields exp(-inf)=0 -> padded lanes stay inert.
        logits = (jnp.dot(joint, w_j_ref[...], preferred_element_type=jnp.float32)
                  + b_j_ref[...]) * inv_temp
        m = jnp.max(logits, axis=-1, keepdims=True)
        e = jnp.exp(logits - m)
        return logits - m - jnp.log(jnp.sum(e, axis=-1, keepdims=True))

    # Single merged output slab (one allocation, one D2H per expansion).
    out_ref[:, LOGP_T_OFF:LOGP_T_OFF + VPAD] = log_probs(enc_ref[0:1, :])
    out_ref[:, LOGP_T1_OFF:LOGP_T1_OFF + VPAD] = log_probs(enc_ref[1:2, :])
    out_ref[:, PRED_OFF:PRED_OFF + H] = pred
    out_ref[:, HS_OFF:HS_OFF + H] = h_new
    out_ref[:, CS_OFF:CS_OFF + H] = c_new
    out_ref[:, CS_OFF + H:OUT_W] = jnp.zeros((MAX_B, OUT_W - CS_OFF - H), jnp.float32)


def _join_kernel(enc_ref, pred_ref, w_j_ref, b_j_ref, logp_ref, *, inv_temp):
    # Standalone joiner, only used on the rare fallback path (hypotheses that
    # survived multiple frames via blank-only extensions, or externally seeded
    # hypotheses) where no cached log-probs for the current frame exist.
    joint = jnp.maximum(enc_ref[...] + pred_ref[...], 0.0)
    logits = (
        jnp.dot(joint, w_j_ref[...], preferred_element_type=jnp.float32)
        + b_j_ref[...]
    ) * inv_temp
    m = jnp.max(logits, axis=-1, keepdims=True)
    e = jnp.exp(logits - m)
    logp_ref[...] = logits - m - jnp.log(jnp.sum(e, axis=-1, keepdims=True))


# ------------------------------ synthetic RNNT -------------------------------
def init_params(key):
    ks = jax.random.split(key, 6)
    s = 0.1
    emb = jax.random.normal(ks[0], (V, E), jnp.float32) * s
    w_x = jax.random.normal(ks[1], (E, 4 * H), jnp.float32) * s    # gate order [i,f,o,g]
    w_h = jax.random.normal(ks[2], (H, 4 * H), jnp.float32) * s
    # Fold the embedding into the token one-hot weight and zero-pad its rows to
    # VP=16 so the gate matmul operand is sublane aligned.
    w_tok = jnp.zeros((VP, 4 * H), jnp.float32).at[:V].set(emb @ w_x)
    # Lane-dense joiner: pad vocab to 128 output lanes, padded bias = -1e30 so
    # the padded lanes never influence the log-softmax.
    w_j = jnp.concatenate(
        [jax.random.normal(ks[5], (H, V), jnp.float32) * s,
         jnp.zeros((H, VPAD - V), jnp.float32)], axis=1)
    b_j = jnp.concatenate(
        [jnp.zeros((1, V), jnp.float32),
         jnp.full((1, VPAD - V), -1e30, jnp.float32)], axis=1)
    return dict(
        enc_w=jax.random.normal(ks[3], (D_IN, H), jnp.float32) * s,
        enc_b=jnp.zeros((1, H), jnp.float32),
        w_tok=w_tok,
        w_h=w_h,
        b_lstm=jnp.zeros((1, 4 * H), jnp.float32),
        w_po=jax.random.normal(ks[4], (H, H), jnp.float32) * s,
        b_po=jnp.zeros((1, H), jnp.float32),
        w_j=w_j,
        b_j=b_j,
    )


class SyntheticRNNT:
    """Minimal RNN-T: linear/tanh encoder, 1-layer LSTM predictor, additive joiner."""

    def __init__(self, params):
        self.p = params
        self._step_cache = {}
        self._join_cache = {}

    # ------------------------- compiled kernel handles -----------------------
    def _step_fn(self, temperature):
        key = float(temperature)
        fn = self._step_cache.get(key)
        if fn is None:
            p = self.p
            call = pl.pallas_call(
                functools.partial(_step_kernel, inv_temp=1.0 / key),
                out_shape=jax.ShapeDtypeStruct((MAX_B, OUT_W), jnp.float32),
                in_specs=[_VMEM] * 11,
                out_specs=_VMEM,
            )

            @jax.jit
            def step(tok, sel, state, enc_pair):
                # Constant weights are closed over (baked into the executable);
                # each dispatch passes only the 4 small dynamic operands.
                return call(tok, sel, state, enc_pair,
                            p["w_tok"], p["w_h"], p["b_lstm"],
                            p["w_po"], p["b_po"], p["w_j"], p["b_j"])

            self._step_cache[key] = fn = step
        return fn

    def _join_fn(self, temperature):
        key = float(temperature)
        fn = self._join_cache.get(key)
        if fn is None:
            p = self.p
            call = pl.pallas_call(
                functools.partial(_join_kernel, inv_temp=1.0 / key),
                out_shape=jax.ShapeDtypeStruct((MAX_B, VPAD), jnp.float32),
                in_specs=[_VMEM] * 4,
                out_specs=_VMEM,
            )

            @jax.jit
            def join(enc_frame, pred):
                return call(enc_frame, pred, p["w_j"], p["b_j"])

            self._join_cache[key] = fn = join
        return fn

    # ------------------------------- model API --------------------------------
    def transcribe(self, inp, length):
        # inp: (1, T, D) -> enc_out (1, T, H)
        x = jnp.asarray(inp, jnp.float32)[0]
        enc = encoder_forward(x, self.p["enc_w"], self.p["enc_b"])
        return enc[None], length

    def step(self, tokens, sel_idx, prev_state, enc_pair, temperature):
        """One fused predictor-LSTM + joiner step for <= MAX_B hypotheses.

        tokens / sel_idx : host ints (new token and row into prev_state per hypo)
        prev_state       : (MAX_B, OUT_W) device slab from a previous step (fast
                           path, no upload) or a host-built numpy slab (fallback)
        enc_pair         : (2, H) numpy [frame t ; frame t+1 or zeros]
        Returns (device slab handle, host copy of the slab).
        """
        B = len(tokens)
        assert B <= MAX_B
        tok = np.full((MAX_B, 1), BLANK, np.int32)
        tok[:B, 0] = np.asarray(tokens, np.int32)
        sel = np.zeros((MAX_B, 1), np.int32)
        sel[:B, 0] = np.asarray(sel_idx, np.int32)
        out = self._step_fn(temperature)(
            tok, sel, prev_state, np.asarray(enc_pair, np.float32))
        out_host = np.asarray(jax.device_get(out))   # single D2H per expansion
        return out, out_host

    def join_log_probs(self, enc_frame, predictor_out, temperature):
        # enc_frame (1, H) numpy, predictor_out (B, 1, H) numpy -> (B, V) log-probs
        B = int(predictor_out.shape[0])
        assert B <= MAX_B
        pred_p = np.zeros((MAX_B, H), np.float32)
        pred_p[:B] = predictor_out.reshape(B, H)
        logp = self._join_fn(temperature)(
            np.asarray(enc_frame, np.float32).reshape(1, H), pred_p)
        return np.asarray(jax.device_get(logp))[:B, :V]


# --------------------------- beam search (host side) -------------------------
# Hypothesis = (tokens: List[int], pred_out: np (1,H), state: [[h,c]] np,
#               score: float, slab_dev: jax.Array|None, row: int,
#               cached: dict {frame t -> np (V,) log-probs})
def _get_hypo_tokens(h): return h[0]
def _get_hypo_predictor_out(h): return h[1]
def _get_hypo_state(h): return h[2]
def _get_hypo_score(h): return h[3]
def _get_hypo_slab(h): return h[4]
def _get_hypo_row(h): return h[5]
def _get_hypo_cache(h): return h[6]
def _get_hypo_key(h): return str(h[0])


def _remove_hypo(hypo, hypo_list):
    for i, elem in enumerate(hypo_list):
        if _get_hypo_key(hypo) == _get_hypo_key(elem):
            del hypo_list[i]
            break


def _compute_updated_scores(hypos, next_token_probs, beam_width):
    hypo_scores = np.array([_get_hypo_score(h) for h in hypos], dtype=np.float32)[:, None]
    nonblank_scores = hypo_scores + next_token_probs[:, :-1]
    flat = nonblank_scores.reshape(-1)
    k = min(beam_width, flat.shape[0])
    idx = np.argsort(-flat, kind="stable")[:k]
    return flat[idx], idx // nonblank_scores.shape[1], idx % nonblank_scores.shape[1]


def _default_hypo_sort_key(hypo):
    return _get_hypo_score(hypo) / (len(_get_hypo_tokens(hypo)) + 1)


class RNNTBeamSearch:
    def __init__(self, model, blank, temperature=1.0, hypo_sort_key=None,
                 step_max_tokens=100):
        self.model = model
        self.blank = blank
        self.temperature = temperature
        self.hypo_sort_key = hypo_sort_key or _default_hypo_sort_key
        self.step_max_tokens = step_max_tokens

    # --------------------------- helpers ---------------------------
    @staticmethod
    def _enc_pair(enc_np, t):
        T = enc_np.shape[0]
        cur = enc_np[t] if t < T else np.zeros((H,), np.float32)
        nxt = enc_np[t + 1] if t + 1 < T else np.zeros((H,), np.float32)
        return np.stack([cur, nxt], axis=0)

    @staticmethod
    def _make_hypo(tokens, host_slab, dev_slab, row, score, t):
        r = host_slab[row]
        pred = r[PRED_OFF:PRED_OFF + H].reshape(1, H).copy()
        h_s = r[HS_OFF:HS_OFF + H].reshape(1, H).copy()
        c_s = r[CS_OFF:CS_OFF + H].reshape(1, H).copy()
        cache = {t: r[LOGP_T_OFF:LOGP_T_OFF + V].copy(),
                 t + 1: r[LOGP_T1_OFF:LOGP_T1_OFF + V].copy()}
        return (tokens, pred, [[h_s, c_s]], score, dev_slab, row, cache)

    def _init_b_hypos(self, enc_np):
        token = self.blank
        zero_state = np.zeros((MAX_B, OUT_W), np.float32)
        dev_slab, host_slab = self.model.step(
            [token], [0], zero_state, self._enc_pair(enc_np, 0), self.temperature)
        return [self._make_hypo([token], host_slab, dev_slab, 0, 0.0, 0)]

    # --------------------------- search core ---------------------------
    def _gen_next_token_probs(self, enc_np, hypos, t):
        # Fast path: every hypothesis already carries cached log-probs for this
        # frame (produced by the fused step kernel) -> no kernel launch.
        cached = [_get_hypo_cache(h).get(t) for h in hypos]
        if all(c is not None for c in cached):
            return np.stack(cached, axis=0)
        predictor_out = np.stack([_get_hypo_predictor_out(h) for h in hypos], axis=0)
        return self.model.join_log_probs(enc_np[t:t + 1], predictor_out, self.temperature)

    def _gen_b_hypos(self, b_hypos, a_hypos, next_token_probs, key_to_b_hypo):
        for i in range(len(a_hypos)):
            h_a = a_hypos[i]
            append_blank_score = _get_hypo_score(h_a) + float(next_token_probs[i, -1])
            key = _get_hypo_key(h_a)
            if key in key_to_b_hypo:
                h_b = key_to_b_hypo[key]
                _remove_hypo(h_b, b_hypos)
                score = float(np.logaddexp(_get_hypo_score(h_b), append_blank_score))
            else:
                score = float(append_blank_score)
            h_b = (_get_hypo_tokens(h_a), _get_hypo_predictor_out(h_a),
                   _get_hypo_state(h_a), score, _get_hypo_slab(h_a),
                   _get_hypo_row(h_a), _get_hypo_cache(h_a))
            b_hypos.append(h_b)
            key_to_b_hypo[_get_hypo_key(h_b)] = h_b
        sorted_idx = np.argsort([_get_hypo_score(h) for h in b_hypos], kind="stable")
        return [b_hypos[int(i)] for i in sorted_idx]

    def _gen_a_hypos(self, a_hypos, b_hypos, next_token_probs, t, beam_width, enc_np):
        scores, hypo_idx, token_idx = _compute_updated_scores(
            a_hypos, next_token_probs, beam_width)
        if len(b_hypos) < beam_width:
            b_nbest_score = -float("inf")
        else:
            b_nbest_score = _get_hypo_score(b_hypos[-beam_width])
        base_hypos, new_tokens, new_scores = [], [], []
        for i in range(len(scores)):
            score = float(scores[i])
            if score > b_nbest_score:
                base_hypos.append(a_hypos[int(hypo_idx[i])])
                new_tokens.append(int(token_idx[i]))
                new_scores.append(score)
        if base_hypos:
            return self._gen_new_hypos(base_hypos, new_tokens, new_scores, t, enc_np)
        return []

    def _gen_new_hypos(self, base_hypos, tokens, scores, t, enc_np):
        # Fast path: all base hypotheses carry rows of the SAME device-resident
        # slab (true for every expansion after the first of a frame), so only
        # the token / row-index int32 vectors go host->device.
        slab0 = _get_hypo_slab(base_hypos[0])
        same_slab = slab0 is not None and all(
            _get_hypo_slab(h) is slab0 for h in base_hypos)
        if same_slab:
            prev_state = slab0
            sel_idx = [_get_hypo_row(h) for h in base_hypos]
        else:
            # Rare path (first expansion of a frame when the surviving beam spans
            # several slabs): rebuild the tiny state slab on the host once.
            prev_state = np.zeros((MAX_B, OUT_W), np.float32)
            for i, h in enumerate(base_hypos):
                st = _get_hypo_state(h)
                prev_state[i, HS_OFF:HS_OFF + H] = st[0][0][0]
                prev_state[i, CS_OFF:CS_OFF + H] = st[0][1][0]
            sel_idx = list(range(len(base_hypos)))
        dev_slab, host_slab = self.model.step(
            tokens, sel_idx, prev_state, self._enc_pair(enc_np, t), self.temperature)
        new_hypos = []
        for i, h_a in enumerate(base_hypos):
            new_tok = _get_hypo_tokens(h_a) + [int(tokens[i])]
            new_hypos.append(self._make_hypo(new_tok, host_slab, dev_slab, i,
                                             float(scores[i]), t))
        return new_hypos

    def _search(self, enc_out, hypo, beam_width):
        # Fetch the (tiny) encoder output once; per-frame slicing is host numpy.
        enc_np = np.asarray(jax.device_get(enc_out))[0]      # (T, H)
        n_time_steps = enc_np.shape[0]
        b_hypos = self._init_b_hypos(enc_np) if hypo is None else hypo
        for t in range(n_time_steps):
            a_hypos = b_hypos
            b_hypos = []
            key_to_b_hypo = {}
            symbols_current_t = 0
            while a_hypos:
                next_token_probs = self._gen_next_token_probs(enc_np, a_hypos, t)
                b_hypos = self._gen_b_hypos(b_hypos, a_hypos, next_token_probs,
                                            key_to_b_hypo)
                if symbols_current_t == self.step_max_tokens:
                    break
                a_hypos = self._gen_a_hypos(a_hypos, b_hypos, next_token_probs, t,
                                            beam_width, enc_np)
                if a_hypos:
                    symbols_current_t += 1
            keys = np.array([self.hypo_sort_key(h) for h in b_hypos])
            k = min(beam_width, len(b_hypos))
            sorted_idx = np.argsort(-keys, kind="stable")[:k]
            b_hypos = [b_hypos[int(i)] for i in sorted_idx]
        return b_hypos

    def forward(self, inp, length, beam_width):
        assert beam_width <= MAX_B
        inp = jnp.asarray(inp, jnp.float32)
        if inp.ndim == 2:
            inp = inp[None]
        enc_out, _ = self.model.transcribe(inp, length)
        return self._search(enc_out, None, beam_width)


# ---------------------------------- main -------------------------------------
if __name__ == "__main__":
    key = jax.random.PRNGKey(0)
    pkey, xkey = jax.random.split(key)
    params = init_params(pkey)
    model = SyntheticRNNT(params)
    # TODO(synk): dynamic hypothesis list / dict dedup / host sorting of the beam
    # search has no clean Pallas equivalent; only the model compute is on-TPU.
    # TODO(synk): a fully on-device per-frame expansion loop (one pallas_call
    # gridded over expansions with VMEM-resident weights, carried h/c/pred/logp
    # scratch and an in-kernel top-k over the 88 candidates) would remove the
    # remaining one dispatch + one D2H per expansion entirely.
    searcher = RNNTBeamSearch(model, blank=BLANK, temperature=1.0, step_max_tokens=10)

    T = 8
    x = jax.random.normal(xkey, (T, D_IN), jnp.float32)   # (T, D) frames
    length = jnp.array([T], jnp.int32)

    # run the encoder kernel once and block on its device result
    enc_out, _ = model.transcribe(jnp.asarray(x)[None], length)
    jax.block_until_ready(enc_out)

    hypos = searcher.forward(x, length, beam_width=3)

    assert 1 <= len(hypos) <= 3
    assert hypos[0][1].shape == (1, H)
    print("KERNEL_OK")
</pallas_src>

<mosaic_0001>
module attributes {stable_mosaic.version = 11 : i64} {
  func.func @_encoder_kernel(%arg0: memref<8x16xf32, #tpu.memory_space<vmem>>, %arg1: memref<16x32xf32, #tpu.memory_space<vmem>>, %arg2: memref<1x32xf32, #tpu.memory_space<vmem>>, %arg3: memref<8x32xf32, #tpu.memory_space<vmem>>) attributes {dimension_semantics = [], scalar_prefetch = 0 : i64, scratch_operands = 0 : i64, tpu.core_type = #tpu.core_type<tc>} {
    %c0 = arith.constant 0 : index
    %c0_0 = arith.constant 0 : index
    %0 = vector.load %arg0[%c0, %c0_0] : memref<8x16xf32, #tpu.memory_space<vmem>>, vector<8x16xf32>
    %c0_1 = arith.constant 0 : index
    %c0_2 = arith.constant 0 : index
    %1 = vector.load %arg1[%c0_1, %c0_2] : memref<16x32xf32, #tpu.memory_space<vmem>>, vector<16x32xf32>
    %cst = arith.constant dense<0.000000e+00> : vector<8x32xf32>
    %2 = tpu.matmul %0, %1, %cst {dimension_numbers = #tpu.dot_dimension_numbers<[1], [0], [0], [1], [0, 0, 1, 1], [], []>} : vector<8x16xf32>, vector<16x32xf32>, vector<8x32xf32> -> vector<8x32xf32>
    %c0_3 = arith.constant 0 : index
    %c0_4 = arith.constant 0 : index
    %3 = vector.load %arg2[%c0_3, %c0_4] : memref<1x32xf32, #tpu.memory_space<vmem>>, vector<1x32xf32>
    %4 = vector.broadcast %3 : vector<1x32xf32> to vector<8x32xf32>
    %5 = arith.addf %2, %4 : vector<8x32xf32>
    %6 = math.tanh %5 : vector<8x32xf32>
    %c0_5 = arith.constant 0 : index
    %c0_6 = arith.constant 0 : index
    %7 = vector.load %arg3[%c0_5, %c0_6] : memref<8x32xf32, #tpu.memory_space<vmem>>, vector<8x32xf32>
    tpu.vector_store %arg3[%c0_5, %c0_6], %6 {strides = array<i32>} : memref<8x32xf32, #tpu.memory_space<vmem>>, vector<8x32xf32>,
    return
  }
}

</mosaic_0001>

<llo_original>
// kernel: tpu_custom_call.1
$region0: #{tpu_custom_call.1}
  #allocation0 [shape = 'u32[]', space=smem, size = 0x4, offset = 0x4, fixed_abs, tag = 'smem constant byte address 0x4 - core index']
  #allocation1 [shape = 'u32[72,128]{1,0:T(1,128)}', space=vmem, size = 0x9000, scoped, tag = 'internal scratch']
  %s0 = inlined_call_operand.hbm [shape: f32[8,16], index: 0, kind: input, shape index: {}]
  %s1 = inlined_call_operand.hbm [shape: f32[16,32], index: 1, kind: input, shape index: {}]
  %s2 = inlined_call_operand.vmem [shape: f32[1,32], index: 2, kind: input, shape index: {}]
  %s3 = inlined_call_operand.hbm [shape: f32[8,32], index: 3, kind: output, shape index: {}]
  %s4 = sld [smem:[#allocation0]]
  $region30: #{tpu_custom_call.1} parent=0
    _
  %s6 = ssub.s32 1, %s4
  %s7 = scalar_select 0, %s6, %s4
  $region1: #{tpu_custom_call.1} parent=0
    #allocation2 [shape = 'u8[4096]{0}', space=vmem, size = 0x1000, scoped, tag = 'input window, operand 0, single buffered']
    #allocation3 [shape = 's32[1]{0}', space=sflag, size = 0x4, scoped, tag = 'scoped memory for tpu_custom_call.1']
    #allocation4 [shape = 's32[1]{0}', space=sflag, size = 0x4, scoped, tag = 'scoped memory for tpu_custom_call.1']
    #allocation5 [shape = 'u8[8192]{0}', space=vmem, size = 0x2000, scoped, tag = 'input window, operand 1, single buffered']
    #allocation6 [shape = 's32[1]{0}', space=sflag, size = 0x4, scoped, tag = 'scoped memory for tpu_custom_call.1']
    #allocation7 [shape = 'u8[4096]{0}', space=vmem, size = 0x1000, scoped, tag = 'output window, operand 0, single buffered']
    %8 = vsyncpa [#allocation3], 0
    %9 = vsyncpa [#allocation6], 0
    %10 = vsyncpa [#allocation4], 0
    // Predicated region
    $region2: #{tpu_custom_call.1} parent=1 // pred_check
      _
    $region3: #{tpu_custom_call.1} parent=1 // pred_check_branch
      %12 = sbr.rel (0) target = $region5
    $region4: #{tpu_custom_call.1} parent=1 // pred_region
      %14 = vsyncadd [#allocation3], 0
      %s16 = sshll.u32 %s0, 4
      %s17 = int_to_ptr.hbm [resolvable:$true] %s16
      %s18 = sshll.u32 [#allocation2], 4
      %s19 = int_to_ptr.vmem [resolvable:$true] %s18
      %21 = dma.hbm_to_vmem [thread:$0]  %s17, 128, %s19, [#allocation3]
    $region5: #{tpu_custom_call.1} parent=1 // pred_fallthru
      _
    // Predicated region
    $region6: #{tpu_custom_call.1} parent=1 // pred_check
      _
    $region7: #{tpu_custom_call.1} parent=1 // pred_check_branch
      %23 = sbr.rel (0) target = $region9
    $region8: #{tpu_custom_call.1} parent=1 // pred_region
      %25 = vsyncadd [#allocation6], 0
      %s26 = sshll.u32 %s1, 4
      %s27 = int_to_ptr.hbm [resolvable:$true] %s26
      %s28 = sshll.u32 [#allocation5], 4
      %s29 = int_to_ptr.vmem [resolvable:$true] %s28
      %34 = dma.hbm_to_vmem [thread:$0]  %s27, 256, %s29, [#allocation6], 128, 128, 8
    $region9: #{tpu_custom_call.1} parent=1 // pred_fallthru
      _
    // Predicated region
    $region10: #{tpu_custom_call.1} parent=1 // pred_check
      _
    $region11: #{tpu_custom_call.1} parent=1 // pred_check_branch
      %36 = sbr.rel (0) target = $region13
    $region12: #{tpu_custom_call.1} parent=1 // pred_region
      _
    $region13: #{tpu_custom_call.1} parent=1 // pred_fallthru
      _
    // Predicated region
    $region14: #{tpu_custom_call.1} parent=1 // pred_check
      _
    $region15: #{tpu_custom_call.1} parent=1 // pred_check_branch
      %38 = sbr.rel (0) target = $region17
    $region16: #{tpu_custom_call.1} parent=1 // pred_region
      %40 = dma.done [#allocation3], 128
    $region17: #{tpu_custom_call.1} parent=1 // pred_fallthru
      _
    // Predicated region
    $region18: #{tpu_custom_call.1} parent=1 // pred_check
      _
    $region19: #{tpu_custom_call.1} parent=1 // pred_check_branch
      %42 = sbr.rel (0) target = $region21
    $region20: #{tpu_custom_call.1} parent=1 // pred_region
      %44 = dma.done [#allocation6], 256
    $region21: #{tpu_custom_call.1} parent=1 // pred_fallthru
      _
    %v45 = vld [vmem:[#allocation2] sm:$0xff]
    %v46 = vld [vmem:[#allocation5] sm:$0xff]
    %v47 = vld [vmem:[#allocation5 + $0x8] sm:$0xff]
    %v48 = vld [vmem:[%s2] sm:$0x1]
    %v50 = vperm.slane %v48, 0
    %vm52 = vcmask 130048
    %v54 = vsel %vm52, %v45, 0
    %56 = vmatpush.msra.mxu0 0.0
    %57 = vmatpush.msra.mxu0 0.0
    %58 = vmatpush.msra.mxu0 0.0
    %59 = vmatpush.msra.mxu0 0.0
    %60 = vmatpush.msra.mxu0 0.0
    %61 = vmatpush.msra.mxu0 0.0
    %62 = vmatpush.msra.mxu0 0.0
    %63 = vmatpush.msra.mxu0 0.0
    %64 = vmatpush.msra.mxu0 0.0
    %65 = vmatpush.msra.mxu0 0.0
    %66 = vmatpush.msra.mxu0 0.0
    %67 = vmatpush.msra.mxu0 0.0
    %68 = vmatpush.msra.mxu0 0.0
    %69 = vmatpush.msra.mxu0 0.0
    %70 = vmatpush.msra.mxu0 %v47
    %71 = vmatpush.msra.mxu0 %v46
    %72 = vmatmul.f32.gmra.mxu0 %v54
    %v73 = vpop.f32.mrf.mxu0
    %v74 = vadd.f32 %v50, %v73
    %75 = vdwg.mxu0
    %v76 = vtanh.pop %v74
    %vm77 = vcmask 261120
    %78 = vst.msk [vmem:[#allocation7] sm:$0xff] %vm77, %v76
    // Predicated region
    $region22: #{tpu_custom_call.1} parent=1 // pred_check
      _
    $region23: #{tpu_custom_call.1} parent=1 // pred_check_branch
      %80 = sbr.rel (0) target = $region25
    $region24: #{tpu_custom_call.1} parent=1 // pred_region
      %82 = vsyncadd [#allocation4], 0
      %s84 = sshll.u32 [#allocation7], 4
      %s85 = int_to_ptr.vmem [resolvable:$true] %s84
      %s86 = sshll.u32 %s3, 4
      %s87 = int_to_ptr.hbm [resolvable:$true] %s86
      %89 = dma.vmem_to_hbm [thread:$0]  %s85, 128, %s87, [#allocation4]
    $region25: #{tpu_custom_call.1} parent=1 // pred_fallthru
      _
    // Predicated region
    $region26: #{tpu_custom_call.1} parent=1 // pred_check
      _
    $region27: #{tpu_custom_call.1} parent=1 // pred_check_branch
      %91 = sbr.rel (0) target = $region29
    $region28: #{tpu_custom_call.1} parent=1 // pred_region
      %93 = dma.done [#allocation4], 128
    $region29: #{tpu_custom_call.1} parent=1 // pred_fallthru
      _
    %94 = vsyncpa [#allocation3], 1
    %95 = vsyncpa [#allocation6], 1
    %96 = vsyncpa [#allocation4], 1

</llo_original>
